<compile_context>
chip_gen: v6e
topology: v6e:2x2x1
jax: 0.10.0
libtpu: 0.0.40
codegen_flags: <defaults>
</compile_context>

<pallas_src>
from functools import partial

import jax
import jax.numpy as jnp
import numpy as np
from jax import lax
from jax.experimental import pallas as pl
from jax.experimental.pallas import tpu as pltpu


# ------------------------------------------------------------------ kernel ---

def _gcn_fused_kernel(x_ref, adj_ref, tcol_ref, m_ref, b_ref, o_ref, *, dot_dtype):
    """Fused Conv1d(k=3,p=1) + normalized-adjacency aggregation for one batch block.

    x_ref    : [Bb*N, K_in]    node features for Bb batches (batch folded into M)
    adj_ref  : [Bb, N, N]      adjacency (with self-loops)
    tcol_ref : [Bb, N, 1]      T[i] = rsqrt(column-degree i), sublane orientation
    m_ref    : [K_in, K_out]   Conv1d(k=3,p=1) folded into a dense matmul operator
    b_ref    : [1, K_out]      bias broadcast over the flattened (c_out*L + l) axis
    o_ref    : [Bb*N, K_out]
    """
    bb, n, _ = adj_ref.shape

    # Conv1d for ALL Bb*N nodes in one lane-dense MXU matmul (batch in the M dim).
    h = jnp.dot(x_ref[...].astype(dot_dtype), m_ref[...].astype(dot_dtype),
                preferred_element_type=jnp.float32) + b_ref[...]        # [Bb*N, K_out] f32

    # Per-batch aggregation: out = diag(T) @ adj @ diag(T) @ h, done as pure
    # row/column scaling (no diag matrices, no extra O(N^3) matmul).
    for b in range(bb):                                   # static unroll; Bb is 1 or 2
        adj_b = adj_ref[b]                                # [N, N]
        # torch: T = sqrt(1/adj.sum(dim=1)) -> COLUMN sums of adj (axis=0 here).
        # rsqrt(0) -> inf for zero-degree nodes, matching the torch module
        # (documented precondition: adjacency includes self-loops).
        t_row = lax.rsqrt(jnp.sum(adj_b, axis=0, keepdims=True))        # [1, N]  T[j] (EUP)
        t_col = tcol_ref[b]                               # [N, 1]  same values, sublane layout
        a_scaled = adj_b * t_row                          # adj[i, j] * T[j]
        h_b = h[b * n:(b + 1) * n, :]                     # [N, K_out]
        agg = jnp.dot(a_scaled.astype(dot_dtype), h_b.astype(dot_dtype),
                      preferred_element_type=jnp.float32)               # [N, K_out]
        o_ref[b * n:(b + 1) * n, :] = (t_col * agg).astype(o_ref.dtype)


# ----------------------------------------------------------------- wrapper ---

def _conv_as_matmul_operator(weight, L):
    """Fold Conv1d(kernel_size=3, padding=1) into a dense [C_in*L, C_out*L] operator.

    h[n, c*L + lo] = sum_{i, li} x[n, i*L + li] * M[i*L + li, c*L + lo]
    with M[i*L + li, c*L + lo] = weight[c, i, li - lo + 1] when the tap is in range,
    else 0 (the zero padding is encoded in the operator; no jnp.pad of activations).
    """
    C_out, C_in, _ = weight.shape
    lr = jnp.arange(L)
    k = lr[:, None] - lr[None, :] + 1                    # [L(li), L(lo)] tap index
    valid = (k >= 0) & (k <= 2)
    kc = jnp.clip(k, 0, 2)
    w_ic = jnp.transpose(weight, (1, 0, 2))              # [C_in, C_out, 3]
    taps = w_ic[:, :, kc]                                # [C_in, C_out, L, L]
    taps = jnp.where(valid[None, None, :, :], taps, 0.0)
    m_op = jnp.transpose(taps, (0, 2, 1, 3)).reshape(C_in * L, C_out * L)
    return m_op.astype(jnp.float32)


def _num_batch_blocks_for_device(B):
    """One grid step per TensorCore: 1 on v5e/v6e (single TC), 2 on v7x (dual TC)."""
    try:
        kind = jax.devices()[0].device_kind.lower()
    except Exception:  # pragma: no cover - defensive
        kind = ""
    num_tc = 2 if "v7" in kind else 1
    gb = max(1, min(num_tc, B))
    while B % gb != 0:
        gb -= 1
    return gb


def graph_convolution(x, adj, weight, bias, *, use_bf16_mxu=False, num_batch_blocks=None):
    """x: [B, N, C_in, L]; adj: [B, N, N]; weight: [C_out, C_in, 3]; bias: [C_out]."""
    B, N, C_in, L = x.shape
    C_out = weight.shape[0]
    K_in, K_out = C_in * L, C_out * L

    # Guard the L^2-sized dense conv operator (it is C_in*C_out*L^2 elements).
    if K_in * K_out * 4 > 8 * 1024 * 1024:
        # TODO(synk): for large L switch to 3 shifted matmuls ([*, C_in] @ [C_in, C_out]
        # with pltpu.roll(x, +-1) and edge masks) instead of the dense operator.
        raise NotImplementedError("dense Conv1d-as-matmul operator too large for VMEM")

    # TODO(synk): for large N, tile the aggregation over adjacency row blocks with a
    # trailing 'arbitrary' reduction grid axis + f32 VMEM accumulator instead of a
    # whole-[N, N] block (budget ~half the v6e tile area on v7x's 64 MiB VMEM).

    if num_batch_blocks is None:
        num_batch_blocks = _num_batch_blocks_for_device(B)
    Gb = max(1, min(num_batch_blocks, B))
    while B % Gb != 0:
        Gb -= 1
    Bb = B // Gb

    dot_dtype = jnp.bfloat16 if use_bf16_mxu else jnp.float32

    adj_f32 = adj.astype(jnp.float32)
    m_op = _conv_as_matmul_operator(weight, L).astype(dot_dtype)        # [K_in, K_out]
    b_flat = jnp.repeat(bias, L).reshape(1, K_out).astype(jnp.float32)  # (c*L + l) layout
    x_g = x.reshape(Gb, Bb * N, K_in).astype(dot_dtype)                 # contiguous reshape
    adj_g = adj_f32.reshape(Gb, Bb, N, N)

    # T[i] = rsqrt(adj.sum(dim=1))[i] in sublane orientation — the only lane->sublane
    # layout move in the whole layer, done once here on a [B, N] vector (tiny input).
    t_col = lax.rsqrt(jnp.sum(adj_f32, axis=1)).reshape(Gb, Bb, N, 1)

    # NOTE: m_op / b_flat have constant block indices; pl.Buffered(1) (or a one-shot
    # scratch load) would halve their VMEM footprint — negligible at these sizes.
    # NOTE: padding K_in up to 128 would fill the MXU K dimension, but costs an extra
    # HBM pass over x at these shapes, so it is skipped here.
    out = pl.pallas_call(
        partial(_gcn_fused_kernel, dot_dtype=dot_dtype),
        out_shape=jax.ShapeDtypeStruct((Gb, Bb * N, K_out), jnp.float32),
        grid=(Gb,),
        in_specs=[
            pl.BlockSpec((None, Bb * N, K_in), lambda g: (g, 0, 0)),
            pl.BlockSpec((None, Bb, N, N), lambda g: (g, 0, 0, 0)),
            pl.BlockSpec((None, Bb, N, 1), lambda g: (g, 0, 0, 0)),
            pl.BlockSpec((K_in, K_out), lambda g: (0, 0)),
            pl.BlockSpec((1, K_out), lambda g: (0, 0)),
        ],
        out_specs=pl.BlockSpec((None, Bb * N, K_out), lambda g: (g, 0, 0)),
        compiler_params=pltpu.CompilerParams(dimension_semantics=("parallel",)),
    )(x_g, adj_g, t_col, m_op, b_flat)

    return out.reshape(B, N, C_out, L)


# --------------------------------------------------------------- reference ---

def _reference(x, adj, weight, bias):
    B, N, C_in, L = x.shape
    C_out = weight.shape[0]
    T = jnp.sqrt(1.0 / adj.sum(axis=1))
    D = jax.vmap(jnp.diag)(T)
    A_bar = D @ adj @ D
    h = lax.conv_general_dilated(
        x.reshape(B * N, C_in, L), weight,
        window_strides=(1,), padding=[(1, 1)],
        dimension_numbers=("NCH", "OIH", "NCH")) + bias[None, :, None]
    h = h.reshape(B, N, -1)
    return (A_bar @ h).reshape(B, N, C_out, L)


# -------------------------------------------------------------------- main ---

if __name__ == "__main__":
    B, N, C_in, C_out, L = 2, 4, 4, 8, 16

    key = jax.random.PRNGKey(0)
    kx, ka, kw, kb, ka2 = jax.random.split(key, 5)

    x = jax.random.normal(kx, (B, N, C_in, L), dtype=jnp.float32)

    # adjacency with self-loops (positive degrees, as the module assumes)
    a_rand = (jax.random.uniform(ka, (B, N, N)) > 0.5).astype(jnp.float32)
    adj = jnp.clip(a_rand + jnp.transpose(a_rand, (0, 2, 1)), 0.0, 1.0)
    adj = jnp.maximum(adj, jnp.eye(N, dtype=jnp.float32)[None, :, :])

    # Conv1d(C_in, C_out, kernel_size=3) parameters
    weight = 0.1 * jax.random.normal(kw, (C_out, C_in, 3), dtype=jnp.float32)
    bias = 0.1 * jax.random.normal(kb, (C_out,), dtype=jnp.float32)

    gcn = jax.jit(graph_convolution, static_argnames=("use_bf16_mxu", "num_batch_blocks"))

    # f32 path vs reference
    out = jax.block_until_ready(gcn(x, adj, weight, bias))
    ref = _reference(x, adj, weight, bias)
    assert out.shape == (B, N, C_out, L), out.shape
    np.testing.assert_allclose(np.asarray(out), np.asarray(ref), rtol=1e-4, atol=1e-4)

    # asymmetric (but self-looped) adjacency: exercises the torch adj.sum(dim=1)
    # column-sum convention exactly.
    adj_asym = (jax.random.uniform(ka2, (B, N, N)) > 0.5).astype(jnp.float32)
    adj_asym = jnp.maximum(adj_asym, jnp.eye(N, dtype=jnp.float32)[None, :, :])
    out_asym = jax.block_until_ready(gcn(x, adj_asym, weight, bias))
    ref_asym = _reference(x, adj_asym, weight, bias)
    np.testing.assert_allclose(np.asarray(out_asym), np.asarray(ref_asym),
                               rtol=1e-4, atol=1e-4)

    # bf16-MXU-operand path (production dtype on v6e/v7x); loose tolerance vs f32 ref.
    out_bf16 = jax.block_until_ready(gcn(x, adj, weight, bias, use_bf16_mxu=True))
    np.testing.assert_allclose(np.asarray(out_bf16), np.asarray(ref), rtol=1e-1, atol=1e-1)

    print("KERNEL_OK")
</pallas_src>

<mosaic_0001>
module attributes {stable_mosaic.version = 11 : i64} {
  func.func @_gcn_fused_kernel(%arg0: i32, %arg1: memref<1x8x64xf32, #tpu.memory_space<vmem>>, %arg2: memref<1x2x4x4xf32, #tpu.memory_space<vmem>>, %arg3: memref<1x2x4x1xf32, #tpu.memory_space<vmem>>, %arg4: memref<64x128xf32, #tpu.memory_space<vmem>>, %arg5: memref<1x128xf32, #tpu.memory_space<vmem>>, %arg6: memref<1x8x128xf32, #tpu.memory_space<vmem>>) attributes {dimension_semantics = [#tpu.dimension_semantics<parallel>], iteration_bounds = array<i64: 1>, scalar_prefetch = 0 : i64, scratch_operands = 0 : i64, tpu.core_type = #tpu.core_type<tc>, window_params = [{transform_indices = @transform_0, window_bounds = array<i64: 1, 8, 64>}, {transform_indices = @transform_1, window_bounds = array<i64: 1, 2, 4, 4>}, {transform_indices = @transform_2, window_bounds = array<i64: 1, 2, 4, 1>}, {pipeline_mode = #tpu.pipeline_mode<synchronous>, transform_indices = @transform_3, window_bounds = array<i64: 64, 128>}, {pipeline_mode = #tpu.pipeline_mode<synchronous>, transform_indices = @transform_4, window_bounds = array<i64: 1, 128>}, {transform_indices = @transform_5, window_bounds = array<i64: 1, 8, 128>}]} {
    %c0 = arith.constant 0 : index
    %c0_0 = arith.constant 0 : index
    %c0_1 = arith.constant 0 : index
    %0 = vector.load %arg1[%c0, %c0_0, %c0_1] : memref<1x8x64xf32, #tpu.memory_space<vmem>>, vector<1x8x64xf32>
    %1 = vector.shape_cast %0 : vector<1x8x64xf32> to vector<8x64xf32>
    %c0_2 = arith.constant 0 : index
    %c0_3 = arith.constant 0 : index
    %2 = vector.load %arg4[%c0_2, %c0_3] : memref<64x128xf32, #tpu.memory_space<vmem>>, vector<64x128xf32>
    %cst = arith.constant dense<0.000000e+00> : vector<8x128xf32>
    %3 = tpu.matmul %1, %2, %cst {dimension_numbers = #tpu.dot_dimension_numbers<[1], [0], [0], [1], [0, 0, 1, 1], [], []>} : vector<8x64xf32>, vector<64x128xf32>, vector<8x128xf32> -> vector<8x128xf32>
    %c0_4 = arith.constant 0 : index
    %c0_5 = arith.constant 0 : index
    %4 = vector.load %arg5[%c0_4, %c0_5] : memref<1x128xf32, #tpu.memory_space<vmem>>, vector<1x128xf32>
    %5 = vector.broadcast %4 : vector<1x128xf32> to vector<8x128xf32>
    %6 = arith.addf %3, %5 : vector<8x128xf32>
    %c0_6 = arith.constant 0 : index
    %c0_7 = arith.constant 0 : index
    %c0_8 = arith.constant 0 : index
    %c0_9 = arith.constant 0 : index
    %7 = vector.load %arg2[%c0_6, %c0_7, %c0_8, %c0_9] : memref<1x2x4x4xf32, #tpu.memory_space<vmem>>, vector<1x1x4x4xf32>
    %8 = vector.shape_cast %7 : vector<1x1x4x4xf32> to vector<4x4xf32>
    %cst_10 = arith.constant dense<0.000000e+00> : vector<4xf32>
    %9 = vector.multi_reduction <add>, %8, %cst_10 [0] : vector<4x4xf32> to vector<4xf32>
    %10 = vector.shape_cast %9 : vector<4xf32> to vector<1x4xf32>
    %11 = math.rsqrt %10 : vector<1x4xf32>
    %c0_11 = arith.constant 0 : index
    %c0_12 = arith.constant 0 : index
    %c0_13 = arith.constant 0 : index
    %c0_14 = arith.constant 0 : index
    %12 = vector.load %arg3[%c0_11, %c0_12, %c0_13, %c0_14] : memref<1x2x4x1xf32, #tpu.memory_space<vmem>>, vector<1x1x4x1xf32>
    %13 = vector.shape_cast %12 : vector<1x1x4x1xf32> to vector<4x1xf32>
    %14 = vector.broadcast %11 : vector<1x4xf32> to vector<4x4xf32>
    %15 = arith.mulf %8, %14 : vector<4x4xf32>
    %16 = vector.extract_strided_slice %6 {offsets = [0, 0], sizes = [4, 128], strides = [1, 1]} : vector<8x128xf32> to vector<4x128xf32>
    %cst_15 = arith.constant dense<0.000000e+00> : vector<4x128xf32>
    %17 = tpu.matmul %15, %16, %cst_15 {dimension_numbers = #tpu.dot_dimension_numbers<[1], [0], [0], [1], [0, 0, 1, 1], [], []>} : vector<4x4xf32>, vector<4x128xf32>, vector<4x128xf32> -> vector<4x128xf32>
    %18 = vector.broadcast %13 : vector<4x1xf32> to vector<4x128xf32>
    %19 = arith.mulf %18, %17 : vector<4x128xf32>
    %c0_16 = arith.constant 0 : index
    %c0_17 = arith.constant 0 : index
    %c0_18 = arith.constant 0 : index
    %20 = vector.load %arg6[%c0_16, %c0_17, %c0_18] : memref<1x8x128xf32, #tpu.memory_space<vmem>>, vector<1x4x128xf32>
    %21 = vector.shape_cast %20 : vector<1x4x128xf32> to vector<4x128xf32>
    %22 = vector.shape_cast %19 : vector<4x128xf32> to vector<1x4x128xf32>
    tpu.vector_store %arg6[%c0_16, %c0_17, %c0_18], %22 {strides = array<i32>} : memref<1x8x128xf32, #tpu.memory_space<vmem>>, vector<1x4x128xf32>,
    %c0_19 = arith.constant 0 : index
    %c1 = arith.constant 1 : index
    %c0_20 = arith.constant 0 : index
    %c0_21 = arith.constant 0 : index
    %23 = vector.load %arg2[%c0_19, %c1, %c0_20, %c0_21] : memref<1x2x4x4xf32, #tpu.memory_space<vmem>>, vector<1x1x4x4xf32>
    %24 = vector.shape_cast %23 : vector<1x1x4x4xf32> to vector<4x4xf32>
    %cst_22 = arith.constant dense<0.000000e+00> : vector<4xf32>
    %25 = vector.multi_reduction <add>, %24, %cst_22 [0] : vector<4x4xf32> to vector<4xf32>
    %26 = vector.shape_cast %25 : vector<4xf32> to vector<1x4xf32>
    %27 = math.rsqrt %26 : vector<1x4xf32>
    %c0_23 = arith.constant 0 : index
    %c1_24 = arith.constant 1 : index
    %c0_25 = arith.constant 0 : index
    %c0_26 = arith.constant 0 : index
    %28 = vector.load %arg3[%c0_23, %c1_24, %c0_25, %c0_26] : memref<1x2x4x1xf32, #tpu.memory_space<vmem>>, vector<1x1x4x1xf32>
    %29 = vector.shape_cast %28 : vector<1x1x4x1xf32> to vector<4x1xf32>
    %30 = vector.broadcast %27 : vector<1x4xf32> to vector<4x4xf32>
    %31 = arith.mulf %24, %30 : vector<4x4xf32>
    %32 = vector.extract_strided_slice %6 {offsets = [4, 0], sizes = [4, 128], strides = [1, 1]} : vector<8x128xf32> to vector<4x128xf32>
    %cst_27 = arith.constant dense<0.000000e+00> : vector<4x128xf32>
    %33 = tpu.matmul %31, %32, %cst_27 {dimension_numbers = #tpu.dot_dimension_numbers<[1], [0], [0], [1], [0, 0, 1, 1], [], []>} : vector<4x4xf32>, vector<4x128xf32>, vector<4x128xf32> -> vector<4x128xf32>
    %34 = vector.broadcast %29 : vector<4x1xf32> to vector<4x128xf32>
    %35 = arith.mulf %34, %33 : vector<4x128xf32>
    %c0_28 = arith.constant 0 : index
    %c4 = arith.constant 4 : index
    %c0_29 = arith.constant 0 : index
    %36 = vector.load %arg6[%c0_28, %c4, %c0_29] : memref<1x8x128xf32, #tpu.memory_space<vmem>>, vector<1x4x128xf32>
    %37 = vector.shape_cast %36 : vector<1x4x128xf32> to vector<4x128xf32>
    %38 = vector.shape_cast %35 : vector<4x128xf32> to vector<1x4x128xf32>
    tpu.vector_store %arg6[%c0_28, %c4, %c0_29], %38 {strides = array<i32>} : memref<1x8x128xf32, #tpu.memory_space<vmem>>, vector<1x4x128xf32>,
    return
  }
  func.func @transform_0(%arg0: i32) -> (i32, i32, i32) {
    %c0_i32 = arith.constant 0 : i32
    %c0_i32_0 = arith.constant 0 : i32
    %c0_i32_1 = arith.constant 0 : i32
    return %arg0, %c0_i32, %c0_i32_0 : i32, i32, i32
  }
  func.func @transform_1(%arg0: i32) -> (i32, i32, i32, i32) {
    %c0_i32 = arith.constant 0 : i32
    %c0_i32_0 = arith.constant 0 : i32
    %c0_i32_1 = arith.constant 0 : i32
    %c0_i32_2 = arith.constant 0 : i32
    return %arg0, %c0_i32, %c0_i32_0, %c0_i32_1 : i32, i32, i32, i32
  }
  func.func @transform_2(%arg0: i32) -> (i32, i32, i32, i32) {
    %c0_i32 = arith.constant 0 : i32
    %c0_i32_0 = arith.constant 0 : i32
    %c0_i32_1 = arith.constant 0 : i32
    %c0_i32_2 = arith.constant 0 : i32
    return %arg0, %c0_i32, %c0_i32_0, %c0_i32_1 : i32, i32, i32, i32
  }
  func.func @transform_3(%arg0: i32) -> (i32, i32) {
    %c0_i32 = arith.constant 0 : i32
    %c0_i32_0 = arith.constant 0 : i32
    %c0_i32_1 = arith.constant 0 : i32
    return %c0_i32, %c0_i32_0 : i32, i32
  }
  func.func @transform_4(%arg0: i32) -> (i32, i32) {
    %c0_i32 = arith.constant 0 : i32
    %c0_i32_0 = arith.constant 0 : i32
    %c0_i32_1 = arith.constant 0 : i32
    return %c0_i32, %c0_i32_0 : i32, i32
  }
  func.func @transform_5(%arg0: i32) -> (i32, i32, i32) {
    %c0_i32 = arith.constant 0 : i32
    %c0_i32_0 = arith.constant 0 : i32
    %c0_i32_1 = arith.constant 0 : i32
    return %arg0, %c0_i32, %c0_i32_0 : i32, i32, i32
  }
}

</mosaic_0001>

<llo_original>
// kernel: graph_convolution.1
$region0: #{graph_convolution.1}
  #allocation0 [shape = 'u32[]', space=smem, size = 0x4, offset = 0x4, fixed_abs, tag = 'smem constant byte address 0x4 - core index']
  #allocation1 [shape = 'u32[144,128]{1,0:T(1,128)}', space=vmem, size = 0x12000, scoped, tag = 'internal scratch']
  %s0 = inlined_call_operand.vmem [shape: f32[1,8,64], index: 0, kind: input, shape index: {}]
  %s1 = inlined_call_operand.vmem [shape: f32[1,2,4,4], index: 1, kind: input, shape index: {}]
  %s2 = inlined_call_operand.vmem [shape: f32[1,2,4,1], index: 2, kind: input, shape index: {}]
  %s3 = inlined_call_operand.vmem [shape: f32[64,128], index: 3, kind: input, shape index: {}]
  %s4 = inlined_call_operand.vmem [shape: f32[1,128], index: 4, kind: input, shape index: {}]
  %s5 = inlined_call_operand.vmem [shape: f32[1,8,128], index: 5, kind: output, shape index: {}]
  %s6 = sld [smem:[#allocation0]]
  $region30: #{graph_convolution.1} parent=0
    _
  %s8 = ssub.s32 1, %s6
  %s9 = scalar_select 0, %s8, %s6
  // Predicated region
  $region2: #{graph_convolution.1} parent=0 // pred_check
    _
  $region3: #{graph_convolution.1} parent=0 // pred_check_branch
    %11 = sbr.rel (0) target = $region5
  $region4: #{graph_convolution.1} parent=0 // pred_region
    _
  $region5: #{graph_convolution.1} parent=0 // pred_fallthru
    _
  // Predicated region
  $region6: #{graph_convolution.1} parent=0 // pred_check
    _
  $region7: #{graph_convolution.1} parent=0 // pred_check_branch
    %13 = sbr.rel (0) target = $region9
  $region8: #{graph_convolution.1} parent=0 // pred_region
    _
  $region9: #{graph_convolution.1} parent=0 // pred_fallthru
    _
  // Predicated region
  $region10: #{graph_convolution.1} parent=0 // pred_check
    _
  $region11: #{graph_convolution.1} parent=0 // pred_check_branch
    %15 = sbr.rel (0) target = $region13
  $region12: #{graph_convolution.1} parent=0 // pred_region
    _
  $region13: #{graph_convolution.1} parent=0 // pred_fallthru
    _
  // Predicated region
  $region14: #{graph_convolution.1} parent=0 // pred_check
    _
  $region15: #{graph_convolution.1} parent=0 // pred_check_branch
    %17 = sbr.rel (0) target = $region17
  $region16: #{graph_convolution.1} parent=0 // pred_region
    _
  $region17: #{graph_convolution.1} parent=0 // pred_fallthru
    _
  // Predicated region
  $region18: #{graph_convolution.1} parent=0 // pred_check
    _
  $region19: #{graph_convolution.1} parent=0 // pred_check_branch
    %19 = sbr.rel (0) target = $region21
  $region20: #{graph_convolution.1} parent=0 // pred_region
    _
  $region21: #{graph_convolution.1} parent=0 // pred_fallthru
    _
  %v20 = vld [vmem:[%s0] sm:$0xff]
  %v21 = vld [vmem:[%s3] sm:$0xff]
  %v22 = vld [vmem:[%s3 + $0x8] sm:$0xff]
  %v23 = vld [vmem:[%s3 + $0x10] sm:$0xff]
  %v24 = vld [vmem:[%s3 + $0x18] sm:$0xff]
  %v25 = vld [vmem:[%s3 + $0x20] sm:$0xff]
  %v26 = vld [vmem:[%s3 + $0x28] sm:$0xff]
  %v27 = vld [vmem:[%s3 + $0x30] sm:$0xff]
  %v28 = vld [vmem:[%s3 + $0x38] sm:$0xff]
  %v29 = vld [vmem:[%s4] sm:$0x1]
  %v31 = vlaneseq
  %v32 = vshrl.u32 %v31, 7
  %v33 = vsub.s32 0, %v32
  %v34 = vrot.slane %v29, %v33
  %vm36 = vcmask 523264
  %v38 = vsel %vm36, %v20, 0
  %40 = vmatprep.subr.mxu0 0.0
  %41 = vmatpush1.msra.mxu0 0.0
  %42 = vmatprep.subr.mxu0 0.0
  %43 = vmatpush1.msra.mxu0 0.0
  %44 = vmatprep.subr.mxu0 0.0
  %45 = vmatpush1.msra.mxu0 0.0
  %46 = vmatprep.subr.mxu0 0.0
  %47 = vmatpush1.msra.mxu0 0.0
  %48 = vmatprep.subr.mxu0 0.0
  %49 = vmatpush1.msra.mxu0 0.0
  %50 = vmatprep.subr.mxu0 0.0
  %51 = vmatpush1.msra.mxu0 0.0
  %52 = vmatprep.subr.mxu0 0.0
  %53 = vmatpush1.msra.mxu0 0.0
  %54 = vmatprep.subr.mxu0 0.0
  %55 = vmatpush1.msra.mxu0 0.0
  %56 = vmatprep.subr.mxu0 0.0
  %57 = vmatpush1.msra.mxu0 %v28
  %58 = vmatprep.subr.mxu0 0.0
  %59 = vmatpush1.msra.mxu0 %v27
  %60 = vmatprep.subr.mxu0 0.0
  %61 = vmatpush1.msra.mxu0 %v26
  %62 = vmatprep.subr.mxu0 0.0
  %63 = vmatpush1.msra.mxu0 %v25
  %64 = vmatprep.subr.mxu0 0.0
  %65 = vmatpush1.msra.mxu0 %v24
  %66 = vmatprep.subr.mxu0 0.0
  %67 = vmatpush1.msra.mxu0 %v23
  %68 = vmatprep.subr.mxu0 0.0
  %69 = vmatpush1.msra.mxu0 %v22
  %70 = vmatprep.subr.mxu0 0.0
  %71 = vmatpush1.msra.mxu0 %v21
  %72 = vmatprep.subr.mxu0 0.0
  %73 = vmatpush2.msra.mxu0 0.0
  %74 = vmatprep.subr.mxu0 0.0
  %75 = vmatpush2.msra.mxu0 0.0
  %76 = vmatprep.subr.mxu0 0.0
  %77 = vmatpush2.msra.mxu0 0.0
  %78 = vmatprep.subr.mxu0 0.0
  %79 = vmatpush2.msra.mxu0 0.0
  %80 = vmatprep.subr.mxu0 0.0
  %81 = vmatpush2.msra.mxu0 0.0
  %82 = vmatprep.subr.mxu0 0.0
  %83 = vmatpush2.msra.mxu0 0.0
  %84 = vmatprep.subr.mxu0 0.0
  %85 = vmatpush2.msra.mxu0 0.0
  %86 = vmatprep.subr.mxu0 0.0
  %87 = vmatpush2.msra.mxu0 0.0
  %88 = vmatprep.subr.mxu0 0.0
  %89 = vmatpush2.msra.mxu0 0.0
  %90 = vmatprep.subr.mxu0 0.0
  %91 = vmatpush2.msra.mxu0 0.0
  %92 = vmatprep.subr.mxu0 0.0
  %93 = vmatpush2.msra.mxu0 0.0
  %94 = vmatprep.subr.mxu0 0.0
  %95 = vmatpush2.msra.mxu0 0.0
  %96 = vmatprep.subr.mxu0 0.0
  %97 = vmatpush2.msra.mxu0 0.0
  %98 = vmatprep.subr.mxu0 0.0
  %99 = vmatpush2.msra.mxu0 0.0
  %100 = vmatprep.subr.mxu0 0.0
  %101 = vmatpush2.msra.mxu0 0.0
  %102 = vmatprep.subr.mxu0 0.0
  %103 = vmatpush2.msra.mxu0 0.0
  %104 = vmatprep.mubr.f32.mxu0 0.0
  %105 = vmatmul.mubr.f32.gmra.mxu0 %v38
  %v106 = vpop.f32.mrf.mxu0
  %v107 = vadd.f32 %v34, %v106
  %v108 = vpop.f32.mrf.mxu0
  %109 = vdwg.mxu0
  %v110 = vld [vmem:[%s1] sm:$0xf]
  %vm111 = vcmask 27648
  %v112 = vsel %vm111, %v110, 0.0
  %v113 = vrot.slane %v112, 4
  %v114 = vadd.f32 %v112, %v113
  %v115 = vrot.slane %v114, 2
  %v116 = vadd.f32 %v114, %v115
  %v117 = vrot.slane %v116, 1
  %v118 = vadd.f32 %v116, %v117
  %v119 = vrsqrt.pop %v118
  %v120 = vld [vmem:[%s2] sm:$0xf]
  %v121 = vmul.f32 %v110, %v119
  %vm122 = vcmask 31744
  %v124 = vsel %vm122, %v121, 0
  %vm126 = vcmask 1043456
  %v128 = vsel %vm126, %v107, 0
  %130 = vmatprep.subr.mxu0 0.0
  %131 = vmatpush1.msra.mxu0 0.0
  %132 = vmatprep.subr.mxu0 0.0
  %133 = vmatpush1.msra.mxu0 0.0
  %134 = vmatprep.subr.mxu0 0.0
  %135 = vmatpush1.msra.mxu0 0.0
  %136 = vmatprep.subr.mxu0 0.0
  %137 = vmatpush1.msra.mxu0 0.0
  %138 = vmatprep.subr.mxu0 0.0
  %139 = vmatpush1.msra.mxu0 0.0
  %140 = vmatprep.subr.mxu0 0.0
  %141 = vmatpush1.msra.mxu0 0.0
  %142 = vmatprep.subr.mxu0 0.0
  %143 = vmatpush1.msra.mxu0 0.0
  %144 = vmatprep.subr.mxu0 0.0
  %145 = vmatpush1.msra.mxu0 0.0
  %146 = vmatprep.subr.mxu0 0.0
  %147 = vmatpush1.msra.mxu0 0.0
  %148 = vmatprep.subr.mxu0 0.0
  %149 = vmatpush1.msra.mxu0 0.0
  %150 = vmatprep.subr.mxu0 0.0
  %151 = vmatpush1.msra.mxu0 0.0
  %152 = vmatprep.subr.mxu0 0.0
  %153 = vmatpush1.msra.mxu0 0.0
  %154 = vmatprep.subr.mxu0 0.0
  %155 = vmatpush1.msra.mxu0 0.0
  %156 = vmatprep.subr.mxu0 0.0
  %157 = vmatpush1.msra.mxu0 0.0
  %158 = vmatprep.subr.mxu0 0.0
  %159 = vmatpush1.msra.mxu0 0.0
  %160 = vmatprep.subr.mxu0 0.0
  %161 = vmatpush1.msra.mxu0 %v128
  %162 = vmatprep.subr.mxu0 0.0
  %163 = vmatpush2.msra.mxu0 0.0
  %164 = vmatprep.subr.mxu0 0.0
  %165 = vmatpush2.msra.mxu0 0.0
  %166 = vmatprep.subr.mxu0 0.0
  %167 = vmatpush2.msra.mxu0 0.0
  %168 = vmatprep.subr.mxu0 0.0
  %169 = vmatpush2.msra.mxu0 0.0
  %170 = vmatprep.subr.mxu0 0.0
  %171 = vmatpush2.msra.mxu0 0.0
  %172 = vmatprep.subr.mxu0 0.0
  %173 = vmatpush2.msra.mxu0 0.0
  %174 = vmatprep.subr.mxu0 0.0
  %175 = vmatpush2.msra.mxu0 0.0
  %176 = vmatprep.subr.mxu0 0.0
  %177 = vmatpush2.msra.mxu0 0.0
  %178 = vmatprep.subr.mxu0 0.0
  %179 = vmatpush2.msra.mxu0 0.0
  %180 = vmatprep.subr.mxu0 0.0
  %181 = vmatpush2.msra.mxu0 0.0
  %182 = vmatprep.subr.mxu0 0.0
  %183 = vmatpush2.msra.mxu0 0.0
  %184 = vmatprep.subr.mxu0 0.0
  %185 = vmatpush2.msra.mxu0 0.0
  %186 = vmatprep.subr.mxu0 0.0
  %187 = vmatpush2.msra.mxu0 0.0
  %188 = vmatprep.subr.mxu0 0.0
  %189 = vmatpush2.msra.mxu0 0.0
  %190 = vmatprep.subr.mxu0 0.0
  %191 = vmatpush2.msra.mxu0 0.0
  %192 = vmatprep.subr.mxu0 0.0
  %193 = vmatpush2.msra.mxu0 0.0
  %194 = vmatprep.mubr.f32.mxu0 0.0
  %195 = vmatmul.mubr.f32.gmra.mxu0 %v124
  %v196 = vpop.f32.mrf.mxu0
  %v197 = vadd.f32 0.0, %v196
  %v198 = vpop.f32.mrf.mxu0
  %199 = vdwg.mxu0
  %201 = vset.pattern.permute.xlu0 0
  %202 = vperm.xlu0 %201, %v120
  %v203 = vpop.permute.xlu0 %202
  %v205 = vmul.f32 %v203, %v197
  %206 = vst [vmem:[%s5] sm:$0xf] %v205
  %s207 = scalar_lea.vmem %s1, 4
  %v208 = vld [vmem:[%s207] sm:$0xf]
  %v209 = vsel %vm111, %v208, 0.0
  %v210 = vrot.slane %v209, 4
  %v211 = vadd.f32 %v209, %v210
  %v212 = vrot.slane %v211, 2
  %v213 = vadd.f32 %v211, %v212
  %v214 = vrot.slane %v213, 1
  %v215 = vadd.f32 %v213, %v214
  %v216 = vrsqrt.pop %v215
  %s217 = scalar_lea.vmem %s2, 4
  %v218 = vld [vmem:[%s217] sm:$0xf]
  %v219 = vmul.f32 %v208, %v216
  %v220 = vrot.slane %v107, 4
  %v222 = vsel %vm122, %v219, 0
  %v224 = vsel %vm126, %v220, 0
  %226 = vmatprep.subr.mxu0 0.0
  %227 = vmatpush1.msra.mxu0 0.0
  %228 = vmatprep.subr.mxu0 0.0
  %229 = vmatpush1.msra.mxu0 0.0
  %230 = vmatprep.subr.mxu0 0.0
  %231 = vmatpush1.msra.mxu0 0.0
  %232 = vmatprep.subr.mxu0 0.0
  %233 = vmatpush1.msra.mxu0 0.0
  %234 = vmatprep.subr.mxu0 0.0
  %235 = vmatpush1.msra.mxu0 0.0
  %236 = vmatprep.subr.mxu0 0.0
  %237 = vmatpush1.msra.mxu0 0.0
  %238 = vmatprep.subr.mxu0 0.0
  %239 = vmatpush1.msra.mxu0 0.0
  %240 = vmatprep.subr.mxu0 0.0
  %241 = vmatpush1.msra.mxu0 0.0
  %242 = vmatprep.subr.mxu0 0.0
  %243 = vmatpush1.msra.mxu0 0.0
  %244 = vmatprep.subr.mxu0 0.0
  %245 = vmatpush1.msra.mxu0 0.0
  %246 = vmatprep.subr.mxu0 0.0
  %247 = vmatpush1.msra.mxu0 0.0
  %248 = vmatprep.subr.mxu0 0.0
  %249 = vmatpush1.msra.mxu0 0.0
  %250 = vmatprep.subr.mxu0 0.0
  %251 = vmatpush1.msra.mxu0 0.0
  %252 = vmatprep.subr.mxu0 0.0
  %253 = vmatpush1.msra.mxu0 0.0
  %254 = vmatprep.subr.mxu0 0.0
  %255 = vmatpush1.msra.mxu0 0.0
  %256 = vmatprep.subr.mxu0 0.0
  %257 = vmatpush1.msra.mxu0 %v224
  %258 = vmatprep.subr.mxu0 0.0
  %259 = vmatpush2.msra.mxu0 0.0
  %260 = vmatprep.subr.mxu0 0.0
  %261 = vmatpush2.msra.mxu0 0.0
  %262 = vmatprep.subr.mxu0 0.0
  %263 = vmatpush2.msra.mxu0 0.0
  %264 = vmatprep.subr.mxu0 0.0
  %265 = vmatpush2.msra.mxu0 0.0
  %266 = vmatprep.subr.mxu0 0.0
  %267 = vmatpush2.msra.mxu0 0.0
  %268 = vmatprep.subr.mxu0 0.0
  %269 = vmatpush2.msra.mxu0 0.0
  %270 = vmatprep.subr.mxu0 0.0
  %271 = vmatpush2.msra.mxu0 0.0
  %272 = vmatprep.subr.mxu0 0.0
  %273 = vmatpush2.msra.mxu0 0.0
  %274 = vmatprep.subr.mxu0 0.0
  %275 = vmatpush2.msra.mxu0 0.0
  %276 = vmatprep.subr.mxu0 0.0
  %277 = vmatpush2.msra.mxu0 0.0
  %278 = vmatprep.subr.mxu0 0.0
  %279 = vmatpush2.msra.mxu0 0.0
  %280 = vmatprep.subr.mxu0 0.0
  %281 = vmatpush2.msra.mxu0 0.0
  %282 = vmatprep.subr.mxu0 0.0
  %283 = vmatpush2.msra.mxu0 0.0
  %284 = vmatprep.subr.mxu0 0.0
  %285 = vmatpush2.msra.mxu0 0.0
  %286 = vmatprep.subr.mxu0 0.0
  %287 = vmatpush2.msra.mxu0 0.0
  %288 = vmatprep.subr.mxu0 0.0
  %289 = vmatpush2.msra.mxu0 0.0
  %290 = vmatprep.mubr.f32.mxu0 0.0
  %291 = vmatmul.mubr.f32.gmra.mxu0 %v222
  %v292 = vpop.f32.mrf.mxu0
  %v293 = vadd.f32 0.0, %v292
  %v294 = vpop.f32.mrf.mxu0
  %295 = vdwg.mxu0
  %297 = vset.pattern.permute.xlu0 0
  %298 = vperm.xlu0 %297, %v218
  %v299 = vpop.permute.xlu0 %298
  %v301 = vmul.f32 %v299, %v293
  %302 = vst [vmem:[%s5 + $0x4] sm:$0xf] %v301
  // Predicated region
  $region22: #{graph_convolution.1} parent=0 // pred_check
    _
  $region23: #{graph_convolution.1} parent=0 // pred_check_branch
    %304 = sbr.rel (0) target = $region25
  $region24: #{graph_convolution.1} parent=0 // pred_region
    _
  $region25: #{graph_convolution.1} parent=0 // pred_fallthru
    _
  // Predicated region
  $region26: #{graph_convolution.1} parent=0 // pred_check
    _
  $region27: #{graph_convolution.1} parent=0 // pred_check_branch
    %306 = sbr.rel (0) target = $region29
  $region28: #{graph_convolution.1} parent=0 // pred_region
    _
  $region29: #{graph_convolution.1} parent=0 // pred_fallthru
    _

</llo_original>
